<compile_context>
chip_gen: v7x
topology: tpu7x:2x2x1
jax: 0.10.0
libtpu: 0.0.40
codegen_flags: <defaults>
</compile_context>

<pallas_src>
import functools

import jax
import jax.numpy as jnp
from jax.experimental import pallas as pl
from jax.experimental.pallas import tpu as pltpu

BN_EPS = 1e-5


# --------------------------------------------------------------------------
# Small-B path: one fused block (BN stats + normalize + matmul).
# --------------------------------------------------------------------------
def _fused_kernel(x_ref, gamma_ref, beta_ref, w_ref, cls_ref, feat_ref):
    x = x_ref[...].astype(jnp.float32)                       # [B, D]
    mean = jnp.mean(x, axis=0, keepdims=True)                # [1, D]
    ex2 = jnp.mean(x * x, axis=0, keepdims=True)             # [1, D]
    var = ex2 - mean * mean                                  # biased batch var
    inv_std = jax.lax.rsqrt(var + BN_EPS)
    scale = inv_std * gamma_ref[...].astype(jnp.float32)     # [1, D]
    shift = beta_ref[...].astype(jnp.float32) - mean * scale # [1, D]
    feat = x * scale + shift                                 # single FMA pass
    feat_ref[...] = feat.astype(feat_ref.dtype)
    # bf16 x bf16 -> f32 accumulation on the MXU (weights arrive as bf16).
    cls_ref[...] = jnp.dot(
        feat.astype(w_ref.dtype), w_ref[...],
        preferred_element_type=jnp.float32,
    ).astype(cls_ref.dtype)


# --------------------------------------------------------------------------
# Large-B path, pass 1: batch-statistics reduction over batch tiles.
# Produces scale = gamma/sqrt(var+eps) and shift = beta - mean*scale.
# --------------------------------------------------------------------------
def _bn_stats_kernel(x_ref, gamma_ref, beta_ref, scale_ref, shift_ref,
                     sum_ref, sumsq_ref, *, total_b):
    i = pl.program_id(0)

    @pl.when(i == 0)
    def _():
        sum_ref[...] = jnp.zeros_like(sum_ref)
        sumsq_ref[...] = jnp.zeros_like(sumsq_ref)

    x = x_ref[...].astype(jnp.float32)                       # [bb, D]
    sum_ref[...] += jnp.sum(x, axis=0, keepdims=True)
    sumsq_ref[...] += jnp.sum(x * x, axis=0, keepdims=True)

    @pl.when(i == pl.num_programs(0) - 1)
    def _():
        inv_n = jnp.float32(1.0 / total_b)
        mean = sum_ref[...] * inv_n
        var = sumsq_ref[...] * inv_n - mean * mean
        inv_std = jax.lax.rsqrt(var + BN_EPS)
        scale = inv_std * gamma_ref[...].astype(jnp.float32)
        scale_ref[...] = scale
        shift_ref[...] = beta_ref[...].astype(jnp.float32) - mean * scale


# --------------------------------------------------------------------------
# Large-B path, pass 2: per-tile normalize (FMA) + matmul; fully parallel.
# --------------------------------------------------------------------------
def _apply_kernel(x_ref, scale_ref, shift_ref, w_ref, cls_ref, feat_ref):
    x = x_ref[...].astype(jnp.float32)                       # [bb, D]
    feat = x * scale_ref[...] + shift_ref[...]
    feat_ref[...] = feat.astype(feat_ref.dtype)
    cls_ref[...] = jnp.dot(
        feat.astype(w_ref.dtype), w_ref[...],
        preferred_element_type=jnp.float32,
    ).astype(cls_ref.dtype)


def person_classifier_forward(x, gamma, beta, w_t, *, block_b=512):
    """x: [B, in_dim] f32; gamma/beta: [in_dim] f32; w_t: [in_dim, num_class]
    (pre-transposed classifier weight, bf16)."""
    B, D = x.shape
    C = w_t.shape[1]
    gamma2 = gamma.reshape(1, D)
    beta2 = beta.reshape(1, D)

    if B <= block_b or B % block_b != 0:
        # Single fused block — at small B this kernel is launch-overhead /
        # DMA-latency bound, so one block with no grid is the right call.
        return pl.pallas_call(
            _fused_kernel,
            out_shape=(
                jax.ShapeDtypeStruct((B, C), jnp.float32),   # cls_score
                jax.ShapeDtypeStruct((B, D), jnp.float32),   # feat_afterBN
            ),
            in_specs=[
                pl.BlockSpec((B, D), lambda: (0, 0)),
                pl.BlockSpec((1, D), lambda: (0, 0)),
                pl.BlockSpec((1, D), lambda: (0, 0)),
                pl.BlockSpec((D, C), lambda: (0, 0)),
            ],
            out_specs=(
                pl.BlockSpec((B, C), lambda: (0, 0)),
                pl.BlockSpec((B, D), lambda: (0, 0)),
            ),
        )(x, gamma2, beta2, w_t)

    # ---- batch-tiled path (B = nb * block_b) ----
    nb = B // block_b

    scale, shift = pl.pallas_call(
        functools.partial(_bn_stats_kernel, total_b=B),
        grid=(nb,),
        out_shape=(
            jax.ShapeDtypeStruct((1, D), jnp.float32),       # scale
            jax.ShapeDtypeStruct((1, D), jnp.float32),       # shift
        ),
        in_specs=[
            pl.BlockSpec((block_b, D), lambda i: (i, 0)),
            pl.BlockSpec((1, D), lambda i: (0, 0)),
            pl.BlockSpec((1, D), lambda i: (0, 0)),
        ],
        out_specs=(
            pl.BlockSpec((1, D), lambda i: (0, 0)),
            pl.BlockSpec((1, D), lambda i: (0, 0)),
        ),
        scratch_shapes=[
            pltpu.VMEM((1, D), jnp.float32),                 # running sum
            pltpu.VMEM((1, D), jnp.float32),                 # running sum of sq
        ],
        compiler_params=pltpu.CompilerParams(
            dimension_semantics=("arbitrary",)),
    )(x, gamma2, beta2)

    cls, feat = pl.pallas_call(
        _apply_kernel,
        grid=(nb,),
        out_shape=(
            jax.ShapeDtypeStruct((B, C), jnp.float32),
            jax.ShapeDtypeStruct((B, D), jnp.float32),
        ),
        in_specs=[
            pl.BlockSpec((block_b, D), lambda i: (i, 0)),
            pl.BlockSpec((1, D), lambda i: (0, 0)),
            pl.BlockSpec((1, D), lambda i: (0, 0)),
            pl.BlockSpec((D, C), lambda i: (0, 0)),
        ],
        out_specs=(
            pl.BlockSpec((block_b, C), lambda i: (i, 0)),
            pl.BlockSpec((block_b, D), lambda i: (i, 0)),
        ),
        compiler_params=pltpu.CompilerParams(
            dimension_semantics=("parallel",)),
    )(x, scale, shift, w_t)
    return cls, feat


def make_params(key, in_dim, num_class):
    # weights_init_kaiming on BatchNorm1d: weight=1, bias=0
    gamma = jnp.ones((in_dim,), jnp.float32)
    beta = jnp.zeros((in_dim,), jnp.float32)
    # weights_init_classifier on Linear: normal(std=0.001), no bias.
    w = 0.001 * jax.random.normal(key, (num_class, in_dim), jnp.float32)
    # Hoisted out of the per-call path: pre-transpose to [D, C] and store in
    # bf16 (MXU-native input, half the DMA bytes).
    w_t = w.T.astype(jnp.bfloat16)
    return gamma, beta, w_t


def _reference(x, gamma, beta, w_t):
    mean = jnp.mean(x, axis=0, keepdims=True)
    var = jnp.mean((x - mean) ** 2, axis=0, keepdims=True)
    feat = (x - mean) / jnp.sqrt(var + BN_EPS) * gamma + beta
    # Match kernel numerics: bf16 operands, f32 accumulation.
    cls = jnp.dot(feat.astype(jnp.bfloat16), w_t,
                  preferred_element_type=jnp.float32)
    return cls, feat


if __name__ == "__main__":
    in_dim, num_class = 256, 128
    key = jax.random.PRNGKey(0)
    kx, kw, kx2 = jax.random.split(key, 3)
    gamma, beta, w_t = make_params(kw, in_dim, num_class)

    # --- small-B fused path ---
    B = 8
    x = jax.random.normal(kx, (B, in_dim), jnp.float32)
    cls_score, feat_after_bn = person_classifier_forward(x, gamma, beta, w_t)
    jax.block_until_ready((cls_score, feat_after_bn))

    cls_ref, feat_ref = _reference(x, gamma, beta, w_t)
    assert jnp.allclose(feat_after_bn, feat_ref, atol=1e-4, rtol=1e-4)
    assert jnp.allclose(cls_score, cls_ref, atol=2e-4, rtol=1e-3)

    # --- batch-tiled path (exercises the grid / two-pass BN) ---
    B2, block_b = 512, 128
    x2 = jax.random.normal(kx2, (B2, in_dim), jnp.float32)
    cls2, feat2 = person_classifier_forward(x2, gamma, beta, w_t,
                                            block_b=block_b)
    jax.block_until_ready((cls2, feat2))

    cls2_ref, feat2_ref = _reference(x2, gamma, beta, w_t)
    assert jnp.allclose(feat2, feat2_ref, atol=1e-4, rtol=1e-4)
    assert jnp.allclose(cls2, cls2_ref, atol=2e-4, rtol=1e-3)

    print("KERNEL_OK")
</pallas_src>

<mosaic_0001>
module attributes {stable_mosaic.version = 11 : i64} {
  func.func @_fused_kernel(%arg0: memref<8x256xf32, #tpu.memory_space<vmem>>, %arg1: memref<1x256xf32, #tpu.memory_space<vmem>>, %arg2: memref<1x256xf32, #tpu.memory_space<vmem>>, %arg3: memref<256x128xbf16, #tpu.memory_space<vmem>>, %arg4: memref<8x128xf32, #tpu.memory_space<vmem>>, %arg5: memref<8x256xf32, #tpu.memory_space<vmem>>) attributes {dimension_semantics = [], scalar_prefetch = 0 : i64, scratch_operands = 0 : i64, tpu.core_type = #tpu.core_type<tc>} {
    %c0 = arith.constant 0 : index
    %c0_0 = arith.constant 0 : index
    %0 = vector.load %arg0[%c0, %c0_0] : memref<8x256xf32, #tpu.memory_space<vmem>>, vector<8x256xf32>
    %cst = arith.constant dense<0.000000e+00> : vector<256xf32>
    %1 = vector.multi_reduction <add>, %0, %cst [0] : vector<8x256xf32> to vector<256xf32>
    %2 = vector.shape_cast %1 : vector<256xf32> to vector<1x256xf32>
    %cst_1 = arith.constant 8.000000e+00 : f32
    %3 = vector.broadcast %cst_1 : f32 to vector<1x256xf32>
    %4 = arith.divf %2, %3 : vector<1x256xf32>
    %5 = arith.mulf %0, %0 : vector<8x256xf32>
    %cst_2 = arith.constant dense<0.000000e+00> : vector<256xf32>
    %6 = vector.multi_reduction <add>, %5, %cst_2 [0] : vector<8x256xf32> to vector<256xf32>
    %7 = vector.shape_cast %6 : vector<256xf32> to vector<1x256xf32>
    %cst_3 = arith.constant 8.000000e+00 : f32
    %8 = vector.broadcast %cst_3 : f32 to vector<1x256xf32>
    %9 = arith.divf %7, %8 : vector<1x256xf32>
    %10 = arith.mulf %4, %4 : vector<1x256xf32>
    %11 = arith.subf %9, %10 : vector<1x256xf32>
    %cst_4 = arith.constant 9.99999974E-6 : f32
    %12 = vector.broadcast %cst_4 : f32 to vector<1x256xf32>
    %13 = arith.addf %11, %12 : vector<1x256xf32>
    %14 = math.rsqrt %13 : vector<1x256xf32>
    %c0_5 = arith.constant 0 : index
    %c0_6 = arith.constant 0 : index
    %15 = vector.load %arg1[%c0_5, %c0_6] : memref<1x256xf32, #tpu.memory_space<vmem>>, vector<1x256xf32>
    %16 = arith.mulf %14, %15 : vector<1x256xf32>
    %c0_7 = arith.constant 0 : index
    %c0_8 = arith.constant 0 : index
    %17 = vector.load %arg2[%c0_7, %c0_8] : memref<1x256xf32, #tpu.memory_space<vmem>>, vector<1x256xf32>
    %18 = arith.mulf %4, %16 : vector<1x256xf32>
    %19 = arith.subf %17, %18 : vector<1x256xf32>
    %20 = vector.broadcast %16 : vector<1x256xf32> to vector<8x256xf32>
    %21 = arith.mulf %0, %20 : vector<8x256xf32>
    %22 = vector.broadcast %19 : vector<1x256xf32> to vector<8x256xf32>
    %23 = arith.addf %21, %22 : vector<8x256xf32>
    %c0_9 = arith.constant 0 : index
    %c0_10 = arith.constant 0 : index
    %24 = vector.load %arg5[%c0_9, %c0_10] : memref<8x256xf32, #tpu.memory_space<vmem>>, vector<8x256xf32>
    tpu.vector_store %arg5[%c0_9, %c0_10], %23 {strides = array<i32>} : memref<8x256xf32, #tpu.memory_space<vmem>>, vector<8x256xf32>,
    %25 = arith.truncf %23 : vector<8x256xf32> to vector<8x256xbf16>
    %c0_11 = arith.constant 0 : index
    %c0_12 = arith.constant 0 : index
    %26 = vector.load %arg3[%c0_11, %c0_12] : memref<256x128xbf16, #tpu.memory_space<vmem>>, vector<256x128xbf16>
    %cst_13 = arith.constant dense<0.000000e+00> : vector<8x128xf32>
    %27 = tpu.matmul %25, %26, %cst_13 {dimension_numbers = #tpu.dot_dimension_numbers<[1], [0], [0], [1], [0, 0, 1, 1], [], []>} : vector<8x256xbf16>, vector<256x128xbf16>, vector<8x128xf32> -> vector<8x128xf32>
    %c0_14 = arith.constant 0 : index
    %c0_15 = arith.constant 0 : index
    %28 = vector.load %arg4[%c0_14, %c0_15] : memref<8x128xf32, #tpu.memory_space<vmem>>, vector<8x128xf32>
    tpu.vector_store %arg4[%c0_14, %c0_15], %27 {strides = array<i32>} : memref<8x128xf32, #tpu.memory_space<vmem>>, vector<8x128xf32>,
    return
  }
}

</mosaic_0001>

<llo_original>
// kernel: tpu_custom_call.1
$region0: #{tpu_custom_call.1}
  #allocation0 [shape = 'u32[]', space=smem, size = 0x4, offset = 0x4, fixed_abs, tag = 'smem constant byte address 0x4 - core index']
  #allocation1 [shape = 'u32[144,128]{1,0:T(1,128)}', space=vmem, size = 0x12000, scoped, tag = 'internal scratch']
  %s0 = inlined_call_operand.hbm [shape: f32[8,256], index: 0, kind: input, shape index: {}]
  %s1 = inlined_call_operand.vmem [shape: f32[1,256], index: 1, kind: input, shape index: {}]
  %s2 = inlined_call_operand.vmem [shape: f32[1,256], index: 2, kind: input, shape index: {}]
  %s3 = inlined_call_operand.hbm [shape: bf16[256,128], index: 3, kind: input, shape index: {}]
  %s4 = inlined_call_operand.hbm [shape: f32[8,128], index: 4, kind: output, shape index: {0}]
  %s5 = inlined_call_operand.hbm [shape: f32[8,256], index: 5, kind: output, shape index: {1}]
  %6 = xla_tuple %s4, %s5
  %s7 = sld [smem:[#allocation0]]
  $region42: #{tpu_custom_call.1} parent=0
    _
  %s9 = ssub.s32 1, %s7
  %s10 = scalar_select 0, %s9, %s7
  $region1: #{tpu_custom_call.1} parent=0
    #allocation2 [shape = 'u8[8192]{0}', space=vmem, size = 0x2000, scoped, tag = 'input window, operand 0, single buffered']
    #allocation3 [shape = 's32[1]{0}', space=sflag, size = 0x4, scoped, tag = 'scoped memory for tpu_custom_call.1']
    #allocation4 [shape = 's32[1]{0}', space=sflag, size = 0x4, scoped, tag = 'scoped memory for tpu_custom_call.1']
    #allocation5 [shape = 'u8[65536]{0}', space=vmem, size = 0x10000, scoped, tag = 'input window, operand 3, single buffered']
    #allocation6 [shape = 's32[1]{0}', space=sflag, size = 0x4, scoped, tag = 'scoped memory for tpu_custom_call.1']
    #allocation7 [shape = 'u8[4096]{0}', space=vmem, size = 0x1000, scoped, tag = 'output window, operand 0, single buffered']
    #allocation8 [shape = 'u8[8192]{0}', space=vmem, size = 0x2000, scoped, tag = 'output window, operand 1, single buffered']
    #allocation9 [shape = 's32[1]{0}', space=sflag, size = 0x4, scoped, tag = 'scoped memory for tpu_custom_call.1']
    %11 = vsyncpa [#allocation3], 0
    %12 = vsyncpa [#allocation6], 0
    %13 = vsyncpa [#allocation4], 0
    %14 = vsyncpa [#allocation9], 0
    // Predicated region
    $region2: #{tpu_custom_call.1} parent=1 // pred_check
      _
    $region3: #{tpu_custom_call.1} parent=1 // pred_check_branch
      %16 = sbr.rel (0) target = $region5
    $region4: #{tpu_custom_call.1} parent=1 // pred_region
      %s18 = ssub.s32 256, 256
      %19 = vsyncadd [#allocation3], %s18
      %s21 = sshll.u32 [#allocation2], 4
      %s22 = int_to_ptr.vmem [resolvable:$true] %s21
      %24 = dma.hbm_to_vmem [thread:$0]  %s0, 256, %s22, [#allocation3]
    $region5: #{tpu_custom_call.1} parent=1 // pred_fallthru
      _
    // Predicated region
    $region6: #{tpu_custom_call.1} parent=1 // pred_check
      _
    $region7: #{tpu_custom_call.1} parent=1 // pred_check_branch
      %26 = sbr.rel (0) target = $region9
    $region8: #{tpu_custom_call.1} parent=1 // pred_region
      _
    $region9: #{tpu_custom_call.1} parent=1 // pred_fallthru
      _
    // Predicated region
    $region10: #{tpu_custom_call.1} parent=1 // pred_check
      _
    $region11: #{tpu_custom_call.1} parent=1 // pred_check_branch
      %28 = sbr.rel (0) target = $region13
    $region12: #{tpu_custom_call.1} parent=1 // pred_region
      _
    $region13: #{tpu_custom_call.1} parent=1 // pred_fallthru
      _
    // Predicated region
    $region14: #{tpu_custom_call.1} parent=1 // pred_check
      _
    $region15: #{tpu_custom_call.1} parent=1 // pred_check_branch
      %30 = sbr.rel (0) target = $region17
    $region16: #{tpu_custom_call.1} parent=1 // pred_region
      %s32 = ssub.s32 2048, 2048
      %33 = vsyncadd [#allocation6], %s32
      %s34 = sshll.u32 [#allocation5], 4
      %s35 = int_to_ptr.vmem [resolvable:$true] %s34
      %40 = dma.hbm_to_vmem [thread:$0]  %s3, 2048, %s35, [#allocation6], 64, 64, 4
    $region17: #{tpu_custom_call.1} parent=1 // pred_fallthru
      _
    // Predicated region
    $region18: #{tpu_custom_call.1} parent=1 // pred_check
      _
    $region19: #{tpu_custom_call.1} parent=1 // pred_check_branch
      %42 = sbr.rel (0) target = $region21
    $region20: #{tpu_custom_call.1} parent=1 // pred_region
      %43 = dma.done [#allocation3], 256
    $region21: #{tpu_custom_call.1} parent=1 // pred_fallthru
      _
    // Predicated region
    $region22: #{tpu_custom_call.1} parent=1 // pred_check
      _
    $region23: #{tpu_custom_call.1} parent=1 // pred_check_branch
      %45 = sbr.rel (0) target = $region25
    $region24: #{tpu_custom_call.1} parent=1 // pred_region
      %46 = dma.done [#allocation6], 2048
    $region25: #{tpu_custom_call.1} parent=1 // pred_fallthru
      _
    %v48 = vld [vmem:[#allocation2] sm:$0xff]
    %v49 = vld [vmem:[#allocation2 + $0x8] sm:$0xff]
    %v50 = vrot.slane %v48, 4
    %v51 = vadd.f32 %v48, %v50
    %v52 = vrot.slane %v51, 2
    %v53 = vadd.f32 %v51, %v52
    %v54 = vrot.slane %v53, 1
    %v55 = vadd.f32 %v53, %v54
    %v56 = vrot.slane %v49, 4
    %v57 = vadd.f32 %v49, %v56
    %v58 = vrot.slane %v57, 2
    %v59 = vadd.f32 %v57, %v58
    %v60 = vrot.slane %v59, 1
    %v61 = vadd.f32 %v59, %v60
    %v62 = vrcp.pop 8.0
    %v63 = vmul.f32 %v55, %v62
    %v64 = vmul.f32 %v61, %v62
    %v65 = vmul.f32 %v48, %v48
    %v66 = vmul.f32 %v49, %v49
    %v67 = vrot.slane %v65, 4
    %v68 = vadd.f32 %v65, %v67
    %v69 = vrot.slane %v68, 2
    %v70 = vadd.f32 %v68, %v69
    %v71 = vrot.slane %v70, 1
    %v72 = vadd.f32 %v70, %v71
    %v73 = vrot.slane %v66, 4
    %v74 = vadd.f32 %v66, %v73
    %v75 = vrot.slane %v74, 2
    %v76 = vadd.f32 %v74, %v75
    %v77 = vrot.slane %v76, 1
    %v78 = vadd.f32 %v76, %v77
    %v79 = vmul.f32 %v72, %v62
    %v80 = vmul.f32 %v78, %v62
    %v81 = vmul.f32 %v63, %v63
    %v82 = vmul.f32 %v64, %v64
    %v83 = vsub.f32 %v79, %v81
    %v84 = vsub.f32 %v80, %v82
    %v85 = vadd.f32 %v83, 1e-05
    %v86 = vadd.f32 %v84, 1e-05
    %v87 = vrsqrt.pop %v85
    %v88 = vrsqrt.pop %v86
    %v89 = vld [vmem:[%s1] sm:$0x3]
    %v91 = vlaneseq
    %v92 = vshrl.u32 %v91, 7
    %v93 = vsub.s32 0, %v92
    %v94 = vrot.slane %v89, %v93
    %v95 = vlaneseq
    %v96 = vshrl.u32 %v95, 7
    %v97 = vsub.s32 1, %v96
    %v98 = vrot.slane %v89, %v97
    %v101 = vmul.f32 %v87, %v94
    %v102 = vmul.f32 %v88, %v98
    %v103 = vld [vmem:[%s2] sm:$0x3]
    %v104 = vmul.f32 %v63, %v101
    %v105 = vmul.f32 %v64, %v102
    %v108 = vcombine.low %v104, %v105
    %v110 = vunpack.c.l.s4 1966171168
    %v111 = vunpack.c.0.s8 %v110
    %v112 = vlaneseq
    %v113 = vshrl.u32 %v112, 7
    %v114 = vsub.s32 %v111, %v113
    %v115 = vrot.slane %v108, %v114
    %v117 = vunpack.c.l.s4 1966171168
    %v118 = vunpack.c.0.s8 %v117
    %v119 = vlaneseq
    %v120 = vshrl.u32 %v119, 7
    %v121 = vsub.s32 %v118, %v120
    %v122 = vrot.slane %v115, %v121
    %v124 = vsub.f32 %v103, %v122
    %v125 = vlaneseq
    %v126 = vshrl.u32 %v125, 7
    %v127 = vsub.s32 0, %v126
    %v128 = vrot.slane %v101, %v127
    %v129 = vlaneseq
    %v130 = vshrl.u32 %v129, 7
    %v131 = vsub.s32 0, %v130
    %v132 = vrot.slane %v102, %v131
    %v133 = vmul.f32 %v48, %v128
    %v134 = vmul.f32 %v49, %v132
    %v136 = vlaneseq
    %v137 = vshrl.u32 %v136, 7
    %v138 = vsub.s32 0, %v137
    %v139 = vrot.slane %v124, %v138
    %v140 = vlaneseq
    %v141 = vshrl.u32 %v140, 7
    %v142 = vsub.s32 1, %v141
    %v143 = vrot.slane %v124, %v142
    %v146 = vadd.f32 %v133, %v139
    %v147 = vadd.f32 %v134, %v143
    %148 = vst [vmem:[#allocation8] sm:$0xff] %v146
    %149 = vst [vmem:[#allocation8 + $0x8] sm:$0xff] %v147
    %v150 = vpack.c.bf16 %v146, %v146
    %v151 = vpack.c.bf16 %v147, %v147
    %v152 = vld [vmem:[#allocation5] sm:$0xf]
    %v153 = vld [vmem:[#allocation5 + $0x4] sm:$0xf]
    %v154 = vld [vmem:[#allocation5 + $0x8] sm:$0xf]
    %v155 = vld [vmem:[#allocation5 + $0xc] sm:$0xf]
    %v156 = vld [vmem:[#allocation5 + $0x10] sm:$0xf]
    %v157 = vld [vmem:[#allocation5 + $0x14] sm:$0xf]
    %v158 = vld [vmem:[#allocation5 + $0x18] sm:$0xf]
    %v159 = vld [vmem:[#allocation5 + $0x1c] sm:$0xf]
    %v160 = vld [vmem:[#allocation5 + $0x20] sm:$0xf]
    %v161 = vld [vmem:[#allocation5 + $0x24] sm:$0xf]
    %v162 = vld [vmem:[#allocation5 + $0x28] sm:$0xf]
    %v163 = vld [vmem:[#allocation5 + $0x2c] sm:$0xf]
    %v164 = vld [vmem:[#allocation5 + $0x30] sm:$0xf]
    %v165 = vld [vmem:[#allocation5 + $0x34] sm:$0xf]
    %v166 = vld [vmem:[#allocation5 + $0x38] sm:$0xf]
    %v167 = vld [vmem:[#allocation5 + $0x3c] sm:$0xf]
    %v168 = vld [vmem:[#allocation5 + $0x40] sm:$0xf]
    %v169 = vld [vmem:[#allocation5 + $0x44] sm:$0xf]
    %v170 = vld [vmem:[#allocation5 + $0x48] sm:$0xf]
    %v171 = vld [vmem:[#allocation5 + $0x4c] sm:$0xf]
    %v172 = vld [vmem:[#allocation5 + $0x50] sm:$0xf]
    %v173 = vld [vmem:[#allocation5 + $0x54] sm:$0xf]
    %v174 = vld [vmem:[#allocation5 + $0x58] sm:$0xf]
    %v175 = vld [vmem:[#allocation5 + $0x5c] sm:$0xf]
    %v176 = vld [vmem:[#allocation5 + $0x60] sm:$0xf]
    %v177 = vld [vmem:[#allocation5 + $0x64] sm:$0xf]
    %v178 = vld [vmem:[#allocation5 + $0x68] sm:$0xf]
    %v179 = vld [vmem:[#allocation5 + $0x6c] sm:$0xf]
    %v180 = vld [vmem:[#allocation5 + $0x70] sm:$0xf]
    %v181 = vld [vmem:[#allocation5 + $0x74] sm:$0xf]
    %v182 = vld [vmem:[#allocation5 + $0x78] sm:$0xf]
    %v183 = vld [vmem:[#allocation5 + $0x7c] sm:$0xf]
    %v216 = vunpack.c.l.b16 %v152
    %v217 = vunpack.c.l.b16 %v153
    %v218 = vunpack.c.l.b16 %v154
    %v219 = vunpack.c.l.b16 %v155
    %v220 = vunpack.c.l.b16 %v156
    %v221 = vunpack.c.l.b16 %v157
    %v222 = vunpack.c.l.b16 %v158
    %v223 = vunpack.c.l.b16 %v159
    %v224 = vunpack.c.l.b16 %v160
    %v225 = vunpack.c.l.b16 %v161
    %v226 = vunpack.c.l.b16 %v162
    %v227 = vunpack.c.l.b16 %v163
    %v228 = vunpack.c.l.b16 %v164
    %v229 = vunpack.c.l.b16 %v165
    %v230 = vunpack.c.l.b16 %v166
    %v231 = vunpack.c.l.b16 %v167
    %v232 = vunpack.c.l.b16 %v168
    %v233 = vunpack.c.l.b16 %v169
    %v234 = vunpack.c.l.b16 %v170
    %v235 = vunpack.c.l.b16 %v171
    %v236 = vunpack.c.l.b16 %v172
    %v237 = vunpack.c.l.b16 %v173
    %v238 = vunpack.c.l.b16 %v174
    %v239 = vunpack.c.l.b16 %v175
    %v240 = vunpack.c.l.b16 %v176
    %v241 = vunpack.c.l.b16 %v177
    %v242 = vunpack.c.l.b16 %v178
    %v243 = vunpack.c.l.b16 %v179
    %v244 = vunpack.c.l.b16 %v180
    %v245 = vunpack.c.l.b16 %v181
    %v246 = vunpack.c.l.b16 %v182
    %v247 = vunpack.c.l.b16 %v183
    %v248 = vpack.c.b16 %v217, %v216
    %v249 = vpack.c.b16 %v219, %v218
    %v250 = vpack.c.b16 %v221, %v220
    %v251 = vpack.c.b16 %v223, %v222
    %v252 = vpack.c.b16 %v225, %v224
    %v253 = vpack.c.b16 %v227, %v226
    %v254 = vpack.c.b16 %v229, %v228
    %v255 = vpack.c.b16 %v231, %v230
    %v256 = vpack.c.b16 %v233, %v232
    %v257 = vpack.c.b16 %v235, %v234
    %v258 = vpack.c.b16 %v237, %v236
    %v259 = vpack.c.b16 %v239, %v238
    %v260 = vpack.c.b16 %v241, %v240
    %v261 = vpack.c.b16 %v243, %v242
    %v262 = vpack.c.b16 %v245, %v244
    %v263 = vpack.c.b16 %v247, %v246
    %280 = vmatprep.subr.bf16.mxu0 0
    %281 = vmatpush1.bf16.msra.mxu0 %v248
    %282 = vmatprep.subr.bf16.mxu0 0
    %283 = vmatpush1.bf16.msra.mxu0 %v249
    %284 = vmatprep.subr.bf16.mxu0 0
    %285 = vmatpush1.bf16.msra.mxu0 %v250
    %286 = vmatprep.subr.bf16.mxu0 0
    %287 = vmatpush1.bf16.msra.mxu0 %v251
    %288 = vmatprep.subr.bf16.mxu0 0
    %289 = vmatpush1.bf16.msra.mxu0 %v252
    %290 = vmatprep.subr.bf16.mxu0 0
    %291 = vmatpush1.bf16.msra.mxu0 %v253
    %292 = vmatprep.subr.bf16.mxu0 0
    %293 = vmatpush1.bf16.msra.mxu0 %v254
    %294 = vmatprep.subr.bf16.mxu0 0
    %295 = vmatpush1.bf16.msra.mxu0 %v255
    %296 = vmatprep.subr.bf16.mxu0 0
    %297 = vmatpush1.bf16.msra.mxu0 %v256
    %298 = vmatprep.subr.bf16.mxu0 0
    %299 = vmatpush1.bf16.msra.mxu0 %v257
    %300 = vmatprep.subr.bf16.mxu0 0
    %301 = vmatpush1.bf16.msra.mxu0 %v258
    %302 = vmatprep.subr.bf16.mxu0 0
    %303 = vmatpush1.bf16.msra.mxu0 %v259
    %304 = vmatprep.subr.bf16.mxu0 0
    %305 = vmatpush1.bf16.msra.mxu0 %v260
    %306 = vmatprep.subr.bf16.mxu0 0
    %307 = vmatpush1.bf16.msra.mxu0 %v261
    %308 = vmatprep.subr.bf16.mxu0 0
    %309 = vmatpush1.bf16.msra.mxu0 %v262
    %310 = vmatprep.subr.bf16.mxu0 0
    %311 = vmatpush1.bf16.msra.mxu0 %v263
    %312 = vmatprep.mubr.bf16.mxu0 %v151
    %313 = vmatmul.mubr.bf16.gmra.mrb[0].mxu0 %v150
    %v314 = vpop.f32.mrb[0].mxu0
    %v315 = vadd.f32 0.0, %v314
    %v316 = vpop.f32.mrb[0].mxu0
    %v317 = vpop.f32.mrb[0].mxu0
    %v318 = vpop.f32.mrb[0].mxu0
    %319 = vdwg.mxu0
    %320 = vst [vmem:[#allocation7] sm:$0xff] %v315
    // Predicated region
    $region26: #{tpu_custom_call.1} parent=1 // pred_check
      _
    $region27: #{tpu_custom_call.1} parent=1 // pred_check_branch
      %322 = sbr.rel (0) target = $region29
    $region28: #{tpu_custom_call.1} parent=1 // pred_region
      %s324 = ssub.s32 128, 128
      %325 = vsyncadd [#allocation4], %s324
      %s327 = sshll.u32 [#allocation7], 4
      %s328 = int_to_ptr.vmem [resolvable:$true] %s327
      %330 = dma.vmem_to_hbm [thread:$0]  %s328, 128, %s4, [#allocation4]
    $region29: #{tpu_custom_call.1} parent=1 // pred_fallthru
      _
    // Predicated region
    $region30: #{tpu_custom_call.1} parent=1 // pred_check
      _
    $region31: #{tpu_custom_call.1} parent=1 // pred_check_branch
      %332 = sbr.rel (0) target = $region33
    $region32: #{tpu_custom_call.1} parent=1 // pred_region
      %s334 = ssub.s32 256, 256
      %335 = vsyncadd [#allocation9], %s334
      %s337 = sshll.u32 [#allocation8], 4
      %s338 = int_to_ptr.vmem [resolvable:$true] %s337
      %340 = dma.vmem_to_hbm [thread:$0]  %s338, 256, %s5, [#allocation9]
    $region33: #{tpu_custom_call.1} parent=1 // pred_fallthru
      _
    // Predicated region
    $region34: #{tpu_custom_call.1} parent=1 // pred_check
      _
    $region35: #{tpu_custom_call.1} parent=1 // pred_check_branch
      %342 = sbr.rel (0) target = $region37
    $region36: #{tpu_custom_call.1} parent=1 // pred_region
      %343 = dma.done [#allocation4], 128
    $region37: #{tpu_custom_call.1} parent=1 // pred_fallthru
      _
    // Predicated region
    $region38: #{tpu_custom_call.1} parent=1 // pred_check
      _
    $region39: #{tpu_custom_call.1} parent=1 // pred_check_branch
      %345 = sbr.rel (0) target = $region41
    $region40: #{tpu_custom_call.1} parent=1 // pred_region
      %346 = dma.done [#allocation9], 256
    $region41: #{tpu_custom_call.1} parent=1 // pred_fallthru
      _
    %347 = vsyncpa [#allocation3], 1
    %348 = vsyncpa [#allocation6], 1
    %349 = vsyncpa [#allocation4], 1
    %350 = vsyncpa [#allocation9], 1

</llo_original>
